<compile_context>
chip_gen: v7x
topology: tpu7x:2x2x1
jax: 0.10.0
libtpu: 0.0.40
codegen_flags: <defaults>
</compile_context>

<pallas_src>
import functools

import jax
import jax.numpy as jnp
from jax.experimental import pallas as pl
from jax.experimental.pallas import tpu as pltpu

_EPS = 1e-5
_NUM_CORES = 2          # v7x has 2 TensorCores; a size-2 "parallel" axis is harmless on v5e/v6e.


@functools.lru_cache(maxsize=None)
def _budgets():
    """(vmem_limit_bytes, per-tile byte target, fused-BN f32 working-set budget)."""
    try:
        cap = int(pltpu.get_tpu_info().vmem_capacity_bytes)
    except Exception:
        cap = 64 << 20                      # conservative fallback: v7x per-TC VMEM
    vmem_limit = min(64 << 20, (cap * 3) // 4)   # ~48 MiB on v7x, 64 MiB on v5e/v6e
    tile_bytes = vmem_limit // 8                 # 2x(in)+2x(out) double-buffered tiles fit easily
    fused_bytes = vmem_limit // 4                # budget for keeping x (as f32) VMEM-resident
    return vmem_limit, tile_bytes, fused_bytes


def _pick_tile_n(n: int, d: int, itemsize: int, target_tile_bytes: int) -> int:
    """Rows per tile: as big as the VMEM budget allows, sublane-aligned, capped at 8192."""
    sub = max(8, 32 // max(1, itemsize))    # 8 for f32, 16 for bf16, 32 for 1-byte dtypes
    rows = target_tile_bytes // max(1, d * itemsize)
    rows = int(max(sub, min(8192, rows)))
    rows = max(sub, (rows // sub) * sub)
    if rows >= n:
        return n                            # single full-extent block (always legal)
    return rows


# ----------------------------- Pallas kernels -----------------------------

def _layernorm_kernel(x_ref, g_ref, b_ref, o_ref, *, d_valid):
    # x_ref: (TILE_N, D_pad). Per-row normalization over the true d_model (= d_valid).
    x = x_ref[...].astype(jnp.float32)
    d_block = x.shape[-1]
    if d_valid == d_block:
        mean = jnp.mean(x, axis=-1, keepdims=True)
        centered = x - mean
        var = jnp.mean(centered * centered, axis=-1, keepdims=True)
    else:
        # Lane-padded case: padded lanes were zero-filled by the wrapper; mask them
        # out of the variance and divide by the true d_model.
        inv_d = jnp.float32(1.0 / d_valid)
        lane = jax.lax.broadcasted_iota(jnp.int32, x.shape, x.ndim - 1)
        mean = jnp.sum(x, axis=-1, keepdims=True) * inv_d
        centered = jnp.where(lane < d_valid, x - mean, 0.0)
        var = jnp.sum(centered * centered, axis=-1, keepdims=True) * inv_d
    inv = jax.lax.rsqrt(var + _EPS)
    y = centered * inv * g_ref[...].astype(jnp.float32) + b_ref[...].astype(jnp.float32)
    o_ref[...] = y.astype(o_ref.dtype)


def _bn_stats_kernel(x_ref, sum_ref, sq_ref, *, n_rows, tile_n, tiles_per_core):
    # Pass 1: per-core per-sublane partial sum / sum-of-squares, accumulated directly
    # into the resident (8, d) output blocks (no scratch).  Grid = (core, tile).
    c = pl.program_id(0)
    i = pl.program_id(1)

    @pl.when(i == 0)
    def _():
        sum_ref[...] = jnp.zeros_like(sum_ref)
        sq_ref[...] = jnp.zeros_like(sq_ref)

    x = x_ref[...].astype(jnp.float32)
    d = x.shape[-1]
    blk = c * tiles_per_core + i
    row0 = blk * tile_n
    is_full = row0 + tile_n <= n_rows

    def _accum(xv):
        xg = xv.reshape(tile_n // 8, 8, d)          # sublane-group split: pure VALU adds
        sum_ref[...] += jnp.sum(xg, axis=0)
        sq_ref[...] += jnp.sum(xg * xg, axis=0)

    @pl.when(is_full)
    def _():
        _accum(x)                                    # fast path: no per-element masking

    @pl.when(jnp.logical_not(is_full))
    def _():
        # Ragged (or fully out-of-range, clamped) tile: mask rows past the true end.
        row = jax.lax.broadcasted_iota(jnp.int32, x.shape, 0) + row0
        _accum(jnp.where(row < n_rows, x, 0.0))


def _bn_apply_kernel(x_ref, scale_ref, shift_ref, o_ref):
    # Pass 2: one FMA per element with the pre-folded affine stats.
    x = x_ref[...].astype(jnp.float32)
    o_ref[...] = (x * scale_ref[...] + shift_ref[...]).astype(o_ref.dtype)


def _bn_fused_kernel(x_ref, g_ref, b_ref, o_ref):
    # Fused BatchNorm when the whole activation fits in VMEM: x is read from HBM once.
    x = x_ref[...].astype(jnp.float32)
    mean = jnp.mean(x, axis=0, keepdims=True)
    var = jnp.maximum(jnp.mean(x * x, axis=0, keepdims=True) - mean * mean, 0.0)
    scale = g_ref[...].astype(jnp.float32) * jax.lax.rsqrt(var + _EPS)
    shift = b_ref[...].astype(jnp.float32) - mean * scale
    o_ref[...] = (x * scale + shift).astype(o_ref.dtype)


# --------------------------- pallas_call wrappers ---------------------------

def _layernorm(x2d, gamma, beta, tile_n, *, d_valid=None):
    n, d = x2d.shape
    if d_valid is None:
        d_valid = d
    tile_n = min(tile_n, n)
    kernel = functools.partial(_layernorm_kernel, d_valid=d_valid)
    return pl.pallas_call(
        kernel,
        out_shape=jax.ShapeDtypeStruct((n, d), x2d.dtype),
        grid=(pl.cdiv(n, tile_n),),
        in_specs=[
            pl.BlockSpec((tile_n, d), lambda i: (i, 0)),
            pl.BlockSpec((1, d), lambda i: (0, 0)),     # gamma stays VMEM-resident
            pl.BlockSpec((1, d), lambda i: (0, 0)),     # beta  stays VMEM-resident
        ],
        out_specs=pl.BlockSpec((tile_n, d), lambda i: (i, 0)),
        compiler_params=pltpu.CompilerParams(
            dimension_semantics=("parallel",),
            vmem_limit_bytes=_budgets()[0],
        ),
    )(x2d, gamma, beta)


def _bn_stats(x2d, tile_n):
    """Per-core partial column sums / sums-of-squares, shape (_NUM_CORES*8, d) each."""
    n, d = x2d.shape
    tile_n = max(8, (min(tile_n, n) // 8) * 8)          # sublane multiple for the reshape
    n_blocks = pl.cdiv(n, tile_n)
    tpc = pl.cdiv(n_blocks, _NUM_CORES)                 # tiles per core
    kernel = functools.partial(_bn_stats_kernel, n_rows=n, tile_n=tile_n,
                               tiles_per_core=tpc)

    def x_map(c, i):
        # Clamp so the DMA block index stays in range; out-of-range logical tiles are
        # fully masked out inside the kernel.
        return (jnp.minimum(c * tpc + i, n_blocks - 1), 0)

    return pl.pallas_call(
        kernel,
        out_shape=(
            jax.ShapeDtypeStruct((_NUM_CORES * 8, d), jnp.float32),   # partial sums
            jax.ShapeDtypeStruct((_NUM_CORES * 8, d), jnp.float32),   # partial sums of squares
        ),
        grid=(_NUM_CORES, tpc),
        in_specs=[pl.BlockSpec((tile_n, d), x_map)],
        out_specs=(
            pl.BlockSpec((8, d), lambda c, i: (c, 0)),
            pl.BlockSpec((8, d), lambda c, i: (c, 0)),
        ),
        compiler_params=pltpu.CompilerParams(
            dimension_semantics=("parallel", "arbitrary"),   # cores parallel, tiles reduce
            vmem_limit_bytes=_budgets()[0],
        ),
    )(x2d)


def _bn_scale_shift(psum, psq, gamma, beta, n_rows):
    # Tiny (1, d) combine + affine fold; done in plain XLA.
    # TODO(synk): E[x^2]-mean^2 in f32 is cancellation-prone for |mean| >> std; a
    # shifted / Welford accumulation would be needed for tight tolerances at huge N.
    total = jnp.sum(psum, axis=0, keepdims=True)
    total_sq = jnp.sum(psq, axis=0, keepdims=True)
    inv_n = jnp.float32(1.0 / n_rows)
    mean = total * inv_n
    var = jnp.maximum(total_sq * inv_n - mean * mean, 0.0)   # biased (training) variance
    scale = gamma.astype(jnp.float32) * jax.lax.rsqrt(var + _EPS)
    shift = beta.astype(jnp.float32) - mean * scale
    return scale, shift


def _bn_apply(x2d, scale, shift, tile_n):
    n, d = x2d.shape
    tile_n = min(tile_n, n)
    return pl.pallas_call(
        _bn_apply_kernel,
        out_shape=jax.ShapeDtypeStruct((n, d), x2d.dtype),
        grid=(pl.cdiv(n, tile_n),),
        in_specs=[
            pl.BlockSpec((tile_n, d), lambda i: (i, 0)),
            pl.BlockSpec((1, d), lambda i: (0, 0)),
            pl.BlockSpec((1, d), lambda i: (0, 0)),
        ],
        out_specs=pl.BlockSpec((tile_n, d), lambda i: (i, 0)),
        compiler_params=pltpu.CompilerParams(
            dimension_semantics=("parallel",),
            vmem_limit_bytes=_budgets()[0],
        ),
    )(x2d, scale, shift)


def _bn_fused(x2d, gamma, beta):
    n, d = x2d.shape
    return pl.pallas_call(
        _bn_fused_kernel,
        out_shape=jax.ShapeDtypeStruct((n, d), x2d.dtype),
        compiler_params=pltpu.CompilerParams(vmem_limit_bytes=_budgets()[0]),
    )(x2d, gamma, beta)


def _batchnorm_two_pass(x2d, gamma, beta, tile_n):
    n, _ = x2d.shape
    psum, psq = _bn_stats(x2d, tile_n)
    scale, shift = _bn_scale_shift(psum, psq, gamma, beta, n)
    return _bn_apply(x2d, scale, shift, tile_n)


# ------------------------------ Module wrapper -----------------------------

class Normalization:
    """JAX/Pallas port of the PyTorch `Normalization` module.

    method='layer'  -> LayerNorm(d_model) over the last axis.
    method='batch'  -> BatchNorm1d(d_model) applied as norm(x.transpose(-1,1)).transpose(-1,1)
                       (training-mode batch statistics over batch & seq).
    method='none'   -> identity.
    """

    def __init__(self, method: str, d_model: int, key=None):
        assert method in ["layer", "batch", "none"]
        self.method = method
        self.d_model = d_model
        if method != "none":
            if key is None:
                # PyTorch defaults: weight = 1, bias = 0.
                self.gamma = jnp.ones((1, d_model), jnp.float32)
                self.beta = jnp.zeros((1, d_model), jnp.float32)
            else:
                kg, kb = jax.random.split(key)
                self.gamma = (1.0 + 0.1 * jax.random.normal(kg, (1, d_model))).astype(jnp.float32)
                self.beta = (0.1 * jax.random.normal(kb, (1, d_model))).astype(jnp.float32)

    def __call__(self, x):
        if self.method == "none":
            return x
        b, s, d = x.shape
        assert d == self.d_model
        x2d = x.reshape(b * s, d)
        gamma, beta = self.gamma, self.beta

        # Lane-dense padding: non-multiple-of-128 d_model would force masked partial
        # stores; pad to 128 lanes (masking the pads out of the LayerNorm statistics,
        # and padding gamma/beta with zeros so BatchNorm pads come out as zeros).
        d_pad = d
        if d % 128 != 0:
            d_pad = ((d + 127) // 128) * 128
            x2d = jnp.pad(x2d, ((0, 0), (0, d_pad - d)))
            gamma = jnp.pad(gamma, ((0, 0), (0, d_pad - d)))
            beta = jnp.pad(beta, ((0, 0), (0, d_pad - d)))

        n = b * s
        _, tile_bytes, fused_bytes = _budgets()
        tile_n = _pick_tile_n(n, d_pad, x2d.dtype.itemsize, tile_bytes)

        if self.method == "layer":
            y2d = _layernorm(x2d, gamma, beta, tile_n, d_valid=d)
        else:  # 'batch'
            # TODO(synk): training-mode batch stats only; no running_mean/var eval path.
            if n * d_pad * 4 <= fused_bytes:
                y2d = _bn_fused(x2d, gamma, beta)            # x read from HBM once
            else:
                y2d = _batchnorm_two_pass(x2d, gamma, beta, tile_n)

        if d_pad != d:
            y2d = y2d[:, :d]
        return y2d.reshape(b, s, d)


# ------------------------------ References ---------------------------------

def _layernorm_ref2d(x2d, gamma, beta):
    mean = jnp.mean(x2d, axis=-1, keepdims=True)
    var = jnp.mean((x2d - mean) ** 2, axis=-1, keepdims=True)
    return (x2d - mean) * jax.lax.rsqrt(var + _EPS) * gamma + beta


def _batchnorm_ref2d(x2d, gamma, beta):
    mean = jnp.mean(x2d, axis=0, keepdims=True)
    var = jnp.mean((x2d - mean) ** 2, axis=0, keepdims=True)
    return (x2d - mean) * jax.lax.rsqrt(var + _EPS) * gamma + beta


# --------------------------------- Main -------------------------------------

if __name__ == "__main__":
    key = jax.random.PRNGKey(0)
    kx, kp, k2, kg2, kb2, k3 = jax.random.split(key, 6)

    # --- module-level tests at the spec-implied small shape (B, S, D) ---
    B, S, D = 2, 8, 32
    x = jax.random.normal(kx, (B, S, D), dtype=jnp.float32)

    ln = Normalization("layer", D, key=kp)            # random affine to exercise gamma/beta
    y_layer = jax.block_until_ready(ln(x))
    ref_layer = _layernorm_ref2d(x.reshape(B * S, D), ln.gamma, ln.beta).reshape(B, S, D)
    assert jnp.allclose(y_layer, ref_layer, atol=1e-4, rtol=1e-4)

    bn = Normalization("batch", D, key=kp)            # fused single-kernel BN path
    y_batch = jax.block_until_ready(bn(x))
    ref_batch = _batchnorm_ref2d(x.reshape(B * S, D), bn.gamma, bn.beta).reshape(B, S, D)
    assert jnp.allclose(y_batch, ref_batch, atol=1e-4, rtol=1e-4)

    ln_def = Normalization("layer", D)                # PyTorch-default weight=1, bias=0
    y_def = jax.block_until_ready(ln_def(x))
    ref_def = _layernorm_ref2d(x.reshape(B * S, D), 1.0, 0.0).reshape(B, S, D)
    assert jnp.allclose(y_def, ref_def, atol=1e-4, rtol=1e-4)

    idn = Normalization("none", D)
    assert jnp.allclose(jax.block_until_ready(idn(x)), x)

    # --- tiled-path tests: multi-tile grid, ragged last tile, core-sharded BN stats ---
    N2, D2 = 200, 128             # 200 = 3*64 + 8 -> last tile partially valid
    TILE2 = 64
    x2 = jax.random.normal(k2, (N2, D2), dtype=jnp.float32)
    g2 = (1.0 + 0.1 * jax.random.normal(kg2, (1, D2))).astype(jnp.float32)
    b2 = (0.1 * jax.random.normal(kb2, (1, D2))).astype(jnp.float32)

    y_ln2 = jax.block_until_ready(_layernorm(x2, g2, b2, TILE2))
    assert jnp.allclose(y_ln2, _layernorm_ref2d(x2, g2, b2), atol=1e-4, rtol=1e-4)

    y_bn2 = jax.block_until_ready(_batchnorm_two_pass(x2, g2, b2, TILE2))
    assert jnp.allclose(y_bn2, _batchnorm_ref2d(x2, g2, b2), atol=1e-4, rtol=1e-4)

    # --- bf16 activations: HBM I/O stays bf16, compute is f32 in-kernel ---
    x3 = jax.random.normal(k3, (N2, D2), dtype=jnp.float32).astype(jnp.bfloat16)
    y_ln3 = jax.block_until_ready(_layernorm(x3, g2, b2, TILE2))
    assert y_ln3.dtype == jnp.bfloat16
    ref3 = _layernorm_ref2d(x3.astype(jnp.float32), g2, b2)
    assert jnp.allclose(y_ln3.astype(jnp.float32), ref3, atol=3e-2, rtol=3e-2)

    print("KERNEL_OK")
</pallas_src>

<mosaic_0001>
module attributes {stable_mosaic.version = 11 : i64} {
  func.func @_layernorm_kernel(%arg0: i32, %arg1: memref<16x128xf32, #tpu.memory_space<vmem>>, %arg2: memref<1x128xf32, #tpu.memory_space<vmem>>, %arg3: memref<1x128xf32, #tpu.memory_space<vmem>>, %arg4: memref<16x128xf32, #tpu.memory_space<vmem>>) attributes {dimension_semantics = [#tpu.dimension_semantics<parallel>], iteration_bounds = array<i64: 1>, scalar_prefetch = 0 : i64, scratch_operands = 0 : i64, tpu.core_type = #tpu.core_type<tc>, window_params = [{transform_indices = @transform_0, window_bounds = array<i64: 16, 128>}, {pipeline_mode = #tpu.pipeline_mode<synchronous>, transform_indices = @transform_1, window_bounds = array<i64: 1, 128>}, {pipeline_mode = #tpu.pipeline_mode<synchronous>, transform_indices = @transform_2, window_bounds = array<i64: 1, 128>}, {transform_indices = @transform_3, window_bounds = array<i64: 16, 128>}]} {
    %c0 = arith.constant 0 : index
    %c0_0 = arith.constant 0 : index
    %0 = vector.load %arg1[%c0, %c0_0] : memref<16x128xf32, #tpu.memory_space<vmem>>, vector<16x128xf32>
    %1 = tpu.iota {dimensions = array<i32: 1>} : vector<16x128xi32>
    %cst = arith.constant dense<0.000000e+00> : vector<16xf32>
    %2 = vector.multi_reduction <add>, %0, %cst [1] : vector<16x128xf32> to vector<16xf32>
    %3 = vector.shape_cast %2 : vector<16xf32> to vector<16x1xf32>
    %cst_1 = arith.constant 3.125000e-02 : f32
    %4 = vector.broadcast %cst_1 : f32 to vector<16x1xf32>
    %5 = arith.mulf %3, %4 : vector<16x1xf32>
    %c32_i32 = arith.constant 32 : i32
    %6 = vector.broadcast %c32_i32 : i32 to vector<16x128xi32>
    %7 = arith.cmpi slt, %1, %6 : vector<16x128xi32>
    %8 = vector.broadcast %5 : vector<16x1xf32> to vector<16x128xf32>
    %9 = arith.subf %0, %8 : vector<16x128xf32>
    %cst_2 = arith.constant 0.000000e+00 : f32
    %10 = vector.broadcast %cst_2 : f32 to vector<16x128xf32>
    %11 = arith.select %7, %9, %10 : vector<16x128xi1>, vector<16x128xf32>
    %12 = arith.mulf %11, %11 : vector<16x128xf32>
    %cst_3 = arith.constant dense<0.000000e+00> : vector<16xf32>
    %13 = vector.multi_reduction <add>, %12, %cst_3 [1] : vector<16x128xf32> to vector<16xf32>
    %14 = vector.shape_cast %13 : vector<16xf32> to vector<16x1xf32>
    %cst_4 = arith.constant 3.125000e-02 : f32
    %15 = vector.broadcast %cst_4 : f32 to vector<16x1xf32>
    %16 = arith.mulf %14, %15 : vector<16x1xf32>
    %cst_5 = arith.constant 9.99999974E-6 : f32
    %17 = vector.broadcast %cst_5 : f32 to vector<16x1xf32>
    %18 = arith.addf %16, %17 : vector<16x1xf32>
    %19 = math.rsqrt %18 : vector<16x1xf32>
    %20 = vector.broadcast %19 : vector<16x1xf32> to vector<16x128xf32>
    %21 = arith.mulf %11, %20 : vector<16x128xf32>
    %c0_6 = arith.constant 0 : index
    %c0_7 = arith.constant 0 : index
    %22 = vector.load %arg2[%c0_6, %c0_7] : memref<1x128xf32, #tpu.memory_space<vmem>>, vector<1x128xf32>
    %23 = vector.broadcast %22 : vector<1x128xf32> to vector<16x128xf32>
    %24 = arith.mulf %21, %23 : vector<16x128xf32>
    %c0_8 = arith.constant 0 : index
    %c0_9 = arith.constant 0 : index
    %25 = vector.load %arg3[%c0_8, %c0_9] : memref<1x128xf32, #tpu.memory_space<vmem>>, vector<1x128xf32>
    %26 = vector.broadcast %25 : vector<1x128xf32> to vector<16x128xf32>
    %27 = arith.addf %24, %26 : vector<16x128xf32>
    %c0_10 = arith.constant 0 : index
    %c0_11 = arith.constant 0 : index
    %28 = vector.load %arg4[%c0_10, %c0_11] : memref<16x128xf32, #tpu.memory_space<vmem>>, vector<16x128xf32>
    tpu.vector_store %arg4[%c0_10, %c0_11], %27 {strides = array<i32>} : memref<16x128xf32, #tpu.memory_space<vmem>>, vector<16x128xf32>,
    return
  }
  func.func @transform_0(%arg0: i32) -> (i32, i32) {
    %c0_i32 = arith.constant 0 : i32
    %c0_i32_0 = arith.constant 0 : i32
    return %arg0, %c0_i32 : i32, i32
  }
  func.func @transform_1(%arg0: i32) -> (i32, i32) {
    %c0_i32 = arith.constant 0 : i32
    %c0_i32_0 = arith.constant 0 : i32
    %c0_i32_1 = arith.constant 0 : i32
    return %c0_i32, %c0_i32_0 : i32, i32
  }
  func.func @transform_2(%arg0: i32) -> (i32, i32) {
    %c0_i32 = arith.constant 0 : i32
    %c0_i32_0 = arith.constant 0 : i32
    %c0_i32_1 = arith.constant 0 : i32
    return %c0_i32, %c0_i32_0 : i32, i32
  }
  func.func @transform_3(%arg0: i32) -> (i32, i32) {
    %c0_i32 = arith.constant 0 : i32
    %c0_i32_0 = arith.constant 0 : i32
    return %arg0, %c0_i32 : i32, i32
  }
}

</mosaic_0001>

<llo_original>
// kernel: tpu_custom_call.1
$region0: #{tpu_custom_call.1}
  #allocation0 [shape = 'u32[]', space=smem, size = 0x4, offset = 0x4, fixed_abs, tag = 'smem constant byte address 0x4 - core index']
  #allocation1 [shape = 'u32[144,128]{1,0:T(1,128)}', space=vmem, size = 0x12000, scoped, tag = 'internal scratch']
  %s0 = inlined_call_operand.hbm [shape: f32[16,128], index: 0, kind: input, shape index: {}]
  %s1 = inlined_call_operand.vmem [shape: f32[1,128], index: 1, kind: input, shape index: {}]
  %s2 = inlined_call_operand.vmem [shape: f32[1,128], index: 2, kind: input, shape index: {}]
  %s3 = inlined_call_operand.hbm [shape: f32[16,128], index: 3, kind: output, shape index: {}]
  %s4 = sld [smem:[#allocation0]]
  $region26: #{tpu_custom_call.1} parent=0
    _
  %s6 = ssub.s32 1, %s4
  %s7 = scalar_select 0, %s6, %s4
  $region1: #{tpu_custom_call.1} parent=0
    #allocation2 [shape = 'u8[8192]{0}', space=vmem, size = 0x2000, scoped, tag = 'input window, operand 0, single buffered']
    #allocation3 [shape = 's32[1]{0}', space=sflag, size = 0x4, scoped, tag = 'scoped memory for tpu_custom_call.1']
    #allocation4 [shape = 's32[1]{0}', space=sflag, size = 0x4, scoped, tag = 'scoped memory for tpu_custom_call.1']
    #allocation5 [shape = 'u8[8192]{0}', space=vmem, size = 0x2000, scoped, tag = 'output window, operand 0, single buffered']
    %8 = vsyncpa [#allocation3], 0
    %9 = vsyncpa [#allocation4], 0
    // Predicated region
    $region2: #{tpu_custom_call.1} parent=1 // pred_check
      _
    $region3: #{tpu_custom_call.1} parent=1 // pred_check_branch
      %11 = sbr.rel (0) target = $region5
    $region4: #{tpu_custom_call.1} parent=1 // pred_region
      %s13 = ssub.s32 256, 256
      %14 = vsyncadd [#allocation3], %s13
      %s15 = sshll.u32 [#allocation2], 4
      %s16 = int_to_ptr.vmem [resolvable:$true] %s15
      %21 = dma.hbm_to_vmem [thread:$0]  %s0, 256, %s16, [#allocation3], 128, 128, 8
    $region5: #{tpu_custom_call.1} parent=1 // pred_fallthru
      _
    // Predicated region
    $region6: #{tpu_custom_call.1} parent=1 // pred_check
      _
    $region7: #{tpu_custom_call.1} parent=1 // pred_check_branch
      %23 = sbr.rel (0) target = $region9
    $region8: #{tpu_custom_call.1} parent=1 // pred_region
      _
    $region9: #{tpu_custom_call.1} parent=1 // pred_fallthru
      _
    // Predicated region
    $region10: #{tpu_custom_call.1} parent=1 // pred_check
      _
    $region11: #{tpu_custom_call.1} parent=1 // pred_check_branch
      %25 = sbr.rel (0) target = $region13
    $region12: #{tpu_custom_call.1} parent=1 // pred_region
      _
    $region13: #{tpu_custom_call.1} parent=1 // pred_fallthru
      _
    // Predicated region
    $region14: #{tpu_custom_call.1} parent=1 // pred_check
      _
    $region15: #{tpu_custom_call.1} parent=1 // pred_check_branch
      %27 = sbr.rel (0) target = $region17
    $region16: #{tpu_custom_call.1} parent=1 // pred_region
      %28 = dma.done [#allocation3], 256
    $region17: #{tpu_custom_call.1} parent=1 // pred_fallthru
      _
    %v29 = vld [vmem:[#allocation2] sm:$0xff]
    %v30 = vld [vmem:[#allocation2 + $0x8] sm:$0xff]
    %v31 = vlaneseq
    %v32 = vand.u32 %v31, 127
    %33 = vadd.xlane.f32.xlu0 %v29
    %v34 = vpop.xlane.xlu0 %33
    %35 = vadd.xlane.f32.xlu0 %v30
    %v36 = vpop.xlane.xlu0 %35
    %v37 = vmul.f32 %v34, 0.03125
    %v38 = vmul.f32 %v36, 0.03125
    %vm39 = vcmp.lt.s32.totalorder %v32, 32
    %v40 = vsub.f32 %v29, %v37
    %v41 = vsub.f32 %v30, %v38
    %v42 = vsel %vm39, %v40, 0.0
    %v43 = vsel %vm39, %v41, 0.0
    %v44 = vmul.f32 %v42, %v42
    %v45 = vmul.f32 %v43, %v43
    %46 = vadd.xlane.f32.xlu0 %v44
    %v47 = vpop.xlane.xlu0 %46
    %48 = vadd.xlane.f32.xlu0 %v45
    %v49 = vpop.xlane.xlu0 %48
    %v50 = vmul.f32 %v47, 0.03125
    %v51 = vmul.f32 %v49, 0.03125
    %v52 = vadd.f32 %v50, 1e-05
    %v53 = vadd.f32 %v51, 1e-05
    %v54 = vrsqrt.pop %v52
    %v55 = vrsqrt.pop %v53
    %v56 = vmul.f32 %v42, %v54
    %v57 = vmul.f32 %v43, %v55
    %v58 = vld [vmem:[%s1] sm:$0x1]
    %v60 = vlaneseq
    %v61 = vshrl.u32 %v60, 7
    %v62 = vsub.s32 0, %v61
    %v63 = vrot.slane %v58, %v62
    %v65 = vmul.f32 %v56, %v63
    %v66 = vmul.f32 %v57, %v63
    %v67 = vld [vmem:[%s2] sm:$0x1]
    %v69 = vlaneseq
    %v70 = vshrl.u32 %v69, 7
    %v71 = vsub.s32 0, %v70
    %v72 = vrot.slane %v67, %v71
    %v74 = vadd.f32 %v65, %v72
    %v75 = vadd.f32 %v66, %v72
    %76 = vst [vmem:[#allocation5] sm:$0xff] %v74
    %77 = vst [vmem:[#allocation5 + $0x8] sm:$0xff] %v75
    // Predicated region
    $region18: #{tpu_custom_call.1} parent=1 // pred_check
      _
    $region19: #{tpu_custom_call.1} parent=1 // pred_check_branch
      %79 = sbr.rel (0) target = $region21
    $region20: #{tpu_custom_call.1} parent=1 // pred_region
      %s81 = ssub.s32 256, 256
      %82 = vsyncadd [#allocation4], %s81
      %s83 = sshll.u32 [#allocation5], 4
      %s84 = int_to_ptr.vmem [resolvable:$true] %s83
      %89 = dma.vmem_to_hbm [thread:$0]  %s84, 256, %s3, [#allocation4], 128, 128, 8
    $region21: #{tpu_custom_call.1} parent=1 // pred_fallthru
      _
    // Predicated region
    $region22: #{tpu_custom_call.1} parent=1 // pred_check
      _
    $region23: #{tpu_custom_call.1} parent=1 // pred_check_branch
      %91 = sbr.rel (0) target = $region25
    $region24: #{tpu_custom_call.1} parent=1 // pred_region
      %92 = dma.done [#allocation4], 256
    $region25: #{tpu_custom_call.1} parent=1 // pred_fallthru
      _
    %93 = vsyncpa [#allocation3], 1
    %94 = vsyncpa [#allocation4], 1

</llo_original>
